<compile_context>
chip_gen: v5e
topology: v5e:2x2
jax: 0.10.0
libtpu: 0.0.40
codegen_flags: <defaults>
</compile_context>

<pallas_src>
import functools

import jax
import jax.numpy as jnp
from jax.experimental import pallas as pl
from jax.experimental.pallas import tpu as pltpu


# ----------------------------------------------------------------------------
# Prologue kernel: xw = x @ W1   (tiny matmul, row-tiled)
# ----------------------------------------------------------------------------
def xw_kernel(x_ref, w1_ref, xw_ref):
    xw = jnp.dot(x_ref[...].astype(jnp.bfloat16), w1_ref[...],
                 preferred_element_type=jnp.float32)
    xw_ref[...] = xw.astype(xw_ref.dtype)


# ----------------------------------------------------------------------------
# Kernel 1: s2 = relu((adj @ xw) + b1) @ W2
#   grid = (N//tm, N//tk); axis 0 = output row tile (parallel),
#                          axis 1 = adj-column reduction (arbitrary, last).
#   xw is VMEM-resident (full array); the k-block is sliced in-kernel.
# ----------------------------------------------------------------------------
def gcn_layer1_kernel(adj_ref, xw_ref, b1_ref, w2_ref, s2_ref, acc_ref, *, tk):
    k = pl.program_id(1)

    @pl.when(k == 0)
    def _():
        acc_ref[...] = jnp.zeros_like(acc_ref)

    koff = pl.multiple_of(k * tk, tk)
    adj_blk = adj_ref[...].astype(jnp.bfloat16)          # f32 tile -> bf16 MXU input
    xw_blk = xw_ref[pl.ds(koff, tk), :]                  # resident bf16 slice
    acc_ref[...] += jnp.dot(adj_blk, xw_blk, preferred_element_type=jnp.float32)

    @pl.when(k == pl.num_programs(1) - 1)
    def _():
        # Epilogue once per row tile: bias + ReLU (f32), then W2 projection.
        h = jnp.maximum(acc_ref[...] + b1_ref[...], 0.0)
        # TODO(synk): F.dropout(training=True) is stochastic; kernel implements
        # eval-mode (identity) dropout. pltpu.prng_seed/prng_random_bits masking
        # of `h` would go here for training mode.
        s2 = jnp.dot(h.astype(jnp.bfloat16), w2_ref[...],
                     preferred_element_type=jnp.float32)
        s2_ref[...] = s2.astype(s2_ref.dtype)


# ----------------------------------------------------------------------------
# Kernel 2: out = adj @ s2 + b2   (same row-parallel / column-reduction grid,
#                                  s2 VMEM-resident)
# ----------------------------------------------------------------------------
def gcn_layer2_kernel(adj_ref, s2_ref, b2_ref, out_ref, acc_ref, *, tk):
    k = pl.program_id(1)

    @pl.when(k == 0)
    def _():
        acc_ref[...] = jnp.zeros_like(acc_ref)

    koff = pl.multiple_of(k * tk, tk)
    acc_ref[...] += jnp.dot(adj_ref[...].astype(jnp.bfloat16),
                            s2_ref[pl.ds(koff, tk), :],
                            preferred_element_type=jnp.float32)

    @pl.when(k == pl.num_programs(1) - 1)
    def _():
        out_ref[...] = (acc_ref[...] + b2_ref[...]).astype(out_ref.dtype)


# ----------------------------------------------------------------------------
# Tile selection
# ----------------------------------------------------------------------------
def _largest_divisor_tile(n, cap):
    """Largest multiple of 128 that divides n and is <= cap (>= 128)."""
    t = max(128, min(cap, n))
    t = (t // 128) * 128
    while t > 128 and n % t != 0:
        t -= 128
    return t


def _pick_tiles(n):
    # Row (parallel) axis: keep >= 2 tiles (prefer >= 4) so v7x's two
    # TensorCores both get work; 128 minimum for MXU alignment.
    tm = _largest_divisor_tile(n, max(128, n // 4))
    if n // tm < 2 and n > 128:
        tm = _largest_divisor_tile(n, n // 2)
    # Reduction axis: as big as comfortably fits (<= 512); 256-multiples feed
    # the 2x256x256 MXU on v6e/v7x with full-width operands.
    tk = _largest_divisor_tile(n, 512)
    return tm, tk


# ----------------------------------------------------------------------------
# Wrapper
# ----------------------------------------------------------------------------
def gcn_forward(adj, x, w1, b1, w2, b2):
    n_orig, f_in = x.shape
    hid = w1.shape[1]
    f_out = w2.shape[1]

    # Pad node count to a multiple of 128 (zero rows/cols contribute nothing
    # and are sliced off at the end).
    n = pl.cdiv(n_orig, 128) * 128
    if n != n_orig:
        adj = jnp.zeros((n, n), adj.dtype).at[:n_orig, :n_orig].set(adj)
        x = jnp.zeros((n, f_in), x.dtype).at[:n_orig, :].set(x)

    tm, tk = _pick_tiles(n)

    # Lane-dense output: pad the class dimension to a multiple of 128 so the
    # kernel writes full-width unmasked slabs; slice the padding off at the end.
    f_out_p = pl.cdiv(f_out, 128) * 128
    w2_p = jnp.zeros((hid, f_out_p), w2.dtype).at[:, :f_out].set(w2)
    b2_p = jnp.zeros((1, f_out_p), b2.dtype).at[:, :f_out].set(b2)

    # Small, resident weights get a one-time bf16 cast (KBs of traffic); adj/x
    # are NOT cast in the wrapper -- their tiles are cast in-kernel to avoid an
    # extra full HBM pass over the N^2 matrix.
    w1_bf = w1.astype(jnp.bfloat16)
    w2_bf = w2_p.astype(jnp.bfloat16)

    # xw / s2 are kept VMEM-resident inside the layer kernels.
    resident_bytes = 2 * n * max(hid, f_out_p)
    assert resident_bytes <= 16 * 1024 * 1024, (
        "xw/s2 residency exceeds the VMEM budget; switch those inputs back to "
        "streamed (tk, feat) blocks for this size")
    # TODO(synk): for very large N, stream xw/s2 per k-block instead of keeping
    # them resident, or block-skip zero adjacency tiles via scalar prefetch.

    vmem_limit = 48 * 1024 * 1024  # portable: fits v5e/v6e (128 MiB) and v7x (64 MiB)
    dimsem2d = ("parallel", "arbitrary")

    # ---- prologue: xw = x @ W1 ----
    cost0 = pl.CostEstimate(
        flops=2 * n * f_in * hid,
        transcendentals=0,
        bytes_accessed=4 * n * f_in + 2 * f_in * hid + 2 * n * hid,
    )
    xw = pl.pallas_call(
        xw_kernel,
        out_shape=jax.ShapeDtypeStruct((n, hid), jnp.bfloat16),
        grid_spec=pltpu.PrefetchScalarGridSpec(
            num_scalar_prefetch=0,
            grid=(n // tm,),
            in_specs=[
                pl.BlockSpec((tm, f_in), lambda i: (i, 0)),     # x row tile (f32)
                pl.BlockSpec((f_in, hid), lambda i: (0, 0)),    # W1 (resident bf16)
            ],
            out_specs=pl.BlockSpec((tm, hid), lambda i: (i, 0)),
        ),
        compiler_params=pltpu.CompilerParams(
            dimension_semantics=("parallel",), vmem_limit_bytes=vmem_limit),
        cost_estimate=cost0,
    )(x, w1_bf)

    grid = (n // tm, n // tk)

    # ---- layer 1 (adj reduction + bias/ReLU/W2 epilogue) ----
    cost1 = pl.CostEstimate(
        flops=2 * n * n * hid + 2 * n * hid * f_out_p,
        transcendentals=0,
        bytes_accessed=(4 * n * n            # adj f32, read once
                        + 2 * n * hid        # resident xw
                        + 2 * hid * f_out_p  # resident W2
                        + 4 * hid            # b1
                        + 2 * n * f_out_p),  # s2 writeback (bf16)
    )
    s2 = pl.pallas_call(
        functools.partial(gcn_layer1_kernel, tk=tk),
        out_shape=jax.ShapeDtypeStruct((n, f_out_p), jnp.bfloat16),
        grid_spec=pltpu.PrefetchScalarGridSpec(
            num_scalar_prefetch=0,
            grid=grid,
            in_specs=[
                pl.BlockSpec((tm, tk), lambda i, k: (i, k)),        # adj tile (f32)
                pl.BlockSpec((n, hid), lambda i, k: (0, 0)),        # xw (resident)
                pl.BlockSpec((1, hid), lambda i, k: (0, 0)),        # b1
                pl.BlockSpec((hid, f_out_p), lambda i, k: (0, 0)),  # W2 (resident)
            ],
            out_specs=pl.BlockSpec((tm, f_out_p), lambda i, k: (i, 0)),
            scratch_shapes=[pltpu.VMEM((tm, hid), jnp.float32)],
        ),
        compiler_params=pltpu.CompilerParams(
            dimension_semantics=dimsem2d, vmem_limit_bytes=vmem_limit),
        cost_estimate=cost1,
    )(adj, xw, b1, w2_bf)

    # ---- layer 2 ----
    cost2 = pl.CostEstimate(
        flops=2 * n * n * f_out_p,
        transcendentals=0,
        bytes_accessed=(4 * n * n            # adj f32, read once
                        + 2 * n * f_out_p    # resident s2
                        + 4 * f_out_p        # b2
                        + 4 * n * f_out_p),  # output writeback (f32)
    )
    out_p = pl.pallas_call(
        functools.partial(gcn_layer2_kernel, tk=tk),
        out_shape=jax.ShapeDtypeStruct((n, f_out_p), jnp.float32),
        grid_spec=pltpu.PrefetchScalarGridSpec(
            num_scalar_prefetch=0,
            grid=grid,
            in_specs=[
                pl.BlockSpec((tm, tk), lambda i, k: (i, k)),       # adj tile (f32)
                pl.BlockSpec((n, f_out_p), lambda i, k: (0, 0)),   # s2 (resident)
                pl.BlockSpec((1, f_out_p), lambda i, k: (0, 0)),   # b2
            ],
            out_specs=pl.BlockSpec((tm, f_out_p), lambda i, k: (i, 0)),
            scratch_shapes=[pltpu.VMEM((tm, f_out_p), jnp.float32)],
        ),
        compiler_params=pltpu.CompilerParams(
            dimension_semantics=dimsem2d, vmem_limit_bytes=vmem_limit),
        cost_estimate=cost2,
    )(adj, s2, b2_p)

    return out_p[:n_orig, :f_out]


# ----------------------------------------------------------------------------
# Parameter init (GraphConvolution.reset_parameters: U(-stdv, stdv), stdv = 1/sqrt(fan_out))
# ----------------------------------------------------------------------------
def init_params(key, f_in, hid, f_out):
    k1, k2, k3, k4 = jax.random.split(key, 4)
    stdv1 = 1.0 / jnp.sqrt(jnp.float32(hid))
    stdv2 = 1.0 / jnp.sqrt(jnp.float32(f_out))
    w1 = jax.random.uniform(k1, (f_in, hid), jnp.float32, -stdv1, stdv1)
    b1 = jax.random.uniform(k2, (1, hid), jnp.float32, -stdv1, stdv1)
    w2 = jax.random.uniform(k3, (hid, f_out), jnp.float32, -stdv2, stdv2)
    b2 = jax.random.uniform(k4, (1, f_out), jnp.float32, -stdv2, stdv2)
    return w1, b1, w2, b2


# ----------------------------------------------------------------------------
# References
# ----------------------------------------------------------------------------
def gcn_reference(adj, x, w1, b1, w2, b2):
    h = jnp.maximum(adj @ (x @ w1) + b1, 0.0)
    return adj @ (h @ w2) + b2


def gcn_reference_bf16(adj, x, w1, b1, w2, b2):
    """Emulates the kernel's bf16-MXU-input / f32-accumulate precision."""
    bf = lambda a: a.astype(jnp.bfloat16)
    xw = jnp.dot(bf(x), bf(w1), preferred_element_type=jnp.float32)
    xw = bf(xw)                                           # stored bf16
    h = jnp.maximum(
        jnp.dot(bf(adj), xw, preferred_element_type=jnp.float32) + b1, 0.0)
    s2 = bf(jnp.dot(bf(h), bf(w2), preferred_element_type=jnp.float32))
    return jnp.dot(bf(adj), s2, preferred_element_type=jnp.float32) + b2


if __name__ == "__main__":
    # nodes, input feats, hidden, output classes
    N, F_IN, HID, F_OUT = 256, 128, 128, 16

    key = jax.random.PRNGKey(0)
    k_adj, k_x, k_params = jax.random.split(key, 3)

    # synthetic symmetric row-normalized adjacency with self-loops
    a = (jax.random.uniform(k_adj, (N, N)) > 0.95).astype(jnp.float32)
    a = jnp.maximum(a, a.T) + jnp.eye(N, dtype=jnp.float32)
    adj = a / jnp.sum(a, axis=1, keepdims=True)

    x = jax.random.normal(k_x, (N, F_IN), jnp.float32)
    w1, b1, w2, b2 = init_params(k_params, F_IN, HID, F_OUT)

    out = gcn_forward(adj, x, w1, b1, w2, b2)
    out = jax.block_until_ready(out)

    assert out.shape == (N, F_OUT)
    ref_bf = gcn_reference_bf16(adj, x, w1, b1, w2, b2)
    ref_f32 = gcn_reference(adj, x, w1, b1, w2, b2)
    assert jnp.allclose(out, ref_bf, atol=1e-2, rtol=1e-2), "mismatch vs bf16-emulated reference"
    assert jnp.allclose(out, ref_f32, atol=5e-2, rtol=5e-2), "mismatch vs f32 reference"

    print("KERNEL_OK")
</pallas_src>

<mosaic_0001>
module attributes {stable_mosaic.version = 11 : i64} {
  func.func @xw_kernel(%arg0: i32, %arg1: memref<128x128xf32, #tpu.memory_space<vmem>>, %arg2: memref<128x128xbf16, #tpu.memory_space<vmem>>, %arg3: memref<128x128xbf16, #tpu.memory_space<vmem>>) attributes {dimension_semantics = [#tpu.dimension_semantics<parallel>], iteration_bounds = array<i64: 2>, scalar_prefetch = 0 : i64, scratch_operands = 0 : i64, tpu.core_type = #tpu.core_type<tc>, window_params = [{transform_indices = @transform_0, window_bounds = array<i64: 128, 128>}, {pipeline_mode = #tpu.pipeline_mode<synchronous>, transform_indices = @transform_1, window_bounds = array<i64: 128, 128>}, {transform_indices = @transform_2, window_bounds = array<i64: 128, 128>}]} {
    %c0 = arith.constant 0 : index
    %c0_0 = arith.constant 0 : index
    %0 = vector.load %arg1[%c0, %c0_0] : memref<128x128xf32, #tpu.memory_space<vmem>>, vector<128x128xf32>
    %1 = arith.truncf %0 : vector<128x128xf32> to vector<128x128xbf16>
    %c0_1 = arith.constant 0 : index
    %c0_2 = arith.constant 0 : index
    %2 = vector.load %arg2[%c0_1, %c0_2] : memref<128x128xbf16, #tpu.memory_space<vmem>>, vector<128x128xbf16>
    %cst = arith.constant dense<0.000000e+00> : vector<128x128xf32>
    %3 = tpu.matmul %1, %2, %cst {dimension_numbers = #tpu.dot_dimension_numbers<[1], [0], [0], [1], [0, 0, 1, 1], [], []>} : vector<128x128xbf16>, vector<128x128xbf16>, vector<128x128xf32> -> vector<128x128xf32>
    %4 = arith.truncf %3 : vector<128x128xf32> to vector<128x128xbf16>
    %c0_3 = arith.constant 0 : index
    %c0_4 = arith.constant 0 : index
    %5 = vector.load %arg3[%c0_3, %c0_4] : memref<128x128xbf16, #tpu.memory_space<vmem>>, vector<128x128xbf16>
    tpu.vector_store %arg3[%c0_3, %c0_4], %4 {strides = array<i32>} : memref<128x128xbf16, #tpu.memory_space<vmem>>, vector<128x128xbf16>,
    return
  }
  func.func @transform_0(%arg0: i32) -> (i32, i32) {
    %c0_i32 = arith.constant 0 : i32
    %c0_i32_0 = arith.constant 0 : i32
    return %arg0, %c0_i32 : i32, i32
  }
  func.func @transform_1(%arg0: i32) -> (i32, i32) {
    %c0_i32 = arith.constant 0 : i32
    %c0_i32_0 = arith.constant 0 : i32
    %c0_i32_1 = arith.constant 0 : i32
    return %c0_i32, %c0_i32_0 : i32, i32
  }
  func.func @transform_2(%arg0: i32) -> (i32, i32) {
    %c0_i32 = arith.constant 0 : i32
    %c0_i32_0 = arith.constant 0 : i32
    return %arg0, %c0_i32 : i32, i32
  }
}

</mosaic_0001>

<llo_original>
// kernel: tpu_custom_call.1
$region0: #{tpu_custom_call.1}
  #allocation0 [shape = 'u32[]', space=smem, size = 0x4, offset = 0x4, fixed_abs, tag = 'smem constant byte address 0x4 - core index']
  #allocation1 [shape = 'u32[72,128]{1,0:T(1,128)}', space=vmem, size = 0x9000, scoped, tag = 'internal scratch']
  %s0 = inlined_call_operand.hbm [shape: f32[256,128], index: 0, kind: input, shape index: {}]
  %s1 = inlined_call_operand.hbm [shape: bf16[128,128], index: 1, kind: input, shape index: {}]
  %s2 = inlined_call_operand.hbm [shape: bf16[256,128], index: 2, kind: output, shape index: {}]
  %s3 = sld [smem:[#allocation0]]
  $region49: #{tpu_custom_call.1} parent=0
    _
  %s5 = ssub.s32 1, %s3
  %s6 = scalar_select 0, %s5, %s3
  $region1: #{tpu_custom_call.1} parent=0
    #allocation2 [shape = 'u8[131072]{0}', space=vmem, size = 0x20000, scoped, tag = 'input window, operand 0']
    #allocation3 [shape = 's32[2]{0}', space=sflag, size = 0x8, scoped, tag = 'scoped memory for tpu_custom_call.1']
    #allocation4 [shape = 's32[2]{0}', space=sflag, size = 0x8, scoped, tag = 'scoped memory for tpu_custom_call.1']
    #allocation5 [shape = 'u8[32768]{0}', space=vmem, size = 0x8000, scoped, tag = 'input window, operand 1, single buffered']
    #allocation6 [shape = 's32[1]{0}', space=sflag, size = 0x4, scoped, tag = 'scoped memory for tpu_custom_call.1']
    #allocation7 [shape = 'u8[65536]{0}', space=vmem, size = 0x10000, scoped, tag = 'output window, operand 0']
    %7 = vsyncpa [#allocation3], 0
    %s8 = scalar_lea.sflag [#allocation3], 1
    %9 = vsyncpa %s8, 0
    %10 = vsyncpa [#allocation6], 0
    %11 = vsyncpa [#allocation4], 0
    %s12 = scalar_lea.sflag [#allocation4], 1
    %13 = vsyncpa %s12, 0
    loop: start=0, step=1, limit=4
    $region2: #{tpu_custom_call.1} parent=1 // loop_pre_header
      _
    $region3: #{tpu_custom_call.1} parent=1 // loop_header
      %s15 = sphi 0, %s19
      %p16 = scmp.ge.s32.totalorder %s15, 4
      %s25 = sphi 0, %s27
      %s28 = sphi 0, %s25
      %s29 = sphi 0, %s28
      %s45 = sphi 0, %s29
      %s49 = sphi 0, %s49
      %s51 = sphi 0, %s49
      %s52 = sphi 0, %s51
      %s66 = sphi 0, %s52
      %s72 = sphi 0, %s74
      %s75 = sphi 0, %s72
      %s76 = sphi 0, %s75
      %s92 = sphi 0, %s76
    $region4: #{tpu_custom_call.1} parent=1 // loop_header_branch
      %18 = sbr.rel (%p16) target = $region8
    $region5: #{tpu_custom_call.1} parent=1 // loop_body
      %s20 = ssub.s32 %s15, 1
      %s21 = ssub.s32 %s15, 2
      %s22 = sadd.s32 %s15, 1
      %s23 = ssub.s32 %s15, %s22
      %p24 = scmp.eq.s32.totalorder %s23, 0
      %s26 = sadd.s32 %s25, 1
      %s27 = scalar_select %p24, %s25, %s26
      %p30 = pneg %p24
      %p31 = scmp.eq.s32.totalorder %s15, 1
      %p32 = por %p30, %p31
      %p33 = scmp.ne.s32.totalorder %s25, %s28
      %p34 = scmp.eq.s32.totalorder %s15, 0
      %p35 = por %p33, %p34
      %p36 = scmp.ne.s32.totalorder %s25, %s28
      %p37 = scmp.eq.s32.totalorder %s20, 1
      %p38 = por %p36, %p37
      %p39 = scmp.ne.s32.totalorder %s28, %s29
      %p40 = scmp.eq.s32.totalorder %s20, 0
      %p41 = por %p39, %p40
      %p42 = scmp.ne.s32.totalorder %s28, %s29
      %p43 = scmp.eq.s32.totalorder %s21, 1
      %p44 = por %p42, %p43
      %p46 = scmp.ne.s32.totalorder %s29, %s45
      %p47 = scmp.eq.s32.totalorder %s21, 0
      %p48 = por %p46, %p47
      %s50 = sadd.s32 %s49, 1
      %p53 = scmp.eq.s32.totalorder %s15, 1
      %p54 = scmp.ne.s32.totalorder %s49, %s51
      %p55 = scmp.eq.s32.totalorder %s15, 0
      %p56 = por %p54, %p55
      %p57 = scmp.ne.s32.totalorder %s49, %s51
      %p58 = scmp.eq.s32.totalorder %s20, 1
      %p59 = por %p57, %p58
      %p60 = scmp.ne.s32.totalorder %s51, %s52
      %p61 = scmp.eq.s32.totalorder %s20, 0
      %p62 = por %p60, %p61
      %p63 = scmp.ne.s32.totalorder %s51, %s52
      %p64 = scmp.eq.s32.totalorder %s21, 1
      %p65 = por %p63, %p64
      %p67 = scmp.ne.s32.totalorder %s52, %s66
      %p68 = scmp.eq.s32.totalorder %s21, 0
      %p69 = por %p67, %p68
      %s70 = ssub.s32 %s15, %s22
      %p71 = scmp.eq.s32.totalorder %s70, 0
      %s73 = sadd.s32 %s72, 1
      %s74 = scalar_select %p71, %s72, %s73
      %p77 = pneg %p71
      %p78 = scmp.eq.s32.totalorder %s15, 1
      %p79 = por %p77, %p78
      %p80 = scmp.ne.s32.totalorder %s72, %s75
      %p81 = scmp.eq.s32.totalorder %s15, 0
      %p82 = por %p80, %p81
      %p83 = scmp.ne.s32.totalorder %s72, %s75
      %p84 = scmp.eq.s32.totalorder %s20, 1
      %p85 = por %p83, %p84
      %p86 = scmp.ne.s32.totalorder %s75, %s76
      %p87 = scmp.eq.s32.totalorder %s20, 0
      %p88 = por %p86, %p87
      %p89 = scmp.ne.s32.totalorder %s75, %s76
      %p90 = scmp.eq.s32.totalorder %s21, 1
      %p91 = por %p89, %p90
      %p93 = scmp.ne.s32.totalorder %s76, %s92
      %p94 = scmp.eq.s32.totalorder %s21, 0
      %p95 = por %p93, %p94
      %p96 = scmp.le.s32.totalorder 1, %s15
      %p97 = scmp.lt.s32.totalorder %s15, 3
      %p98 = pnand %p96, %p97
      %p99 = pneg %p98
      // Predicated region
      $region9: #{tpu_custom_call.1} parent=5 // pred_check
        _
      $region10: #{tpu_custom_call.1} parent=5 // pred_check_branch
        %101 = sbr.rel (%p98) target = $region12
      $region11: #{tpu_custom_call.1} parent=5 // pred_region
        %s102 = ssub.s32 %s15, 1
        // Predicated region
        $region13: #{tpu_custom_call.1} parent=11 // pred_check
          %p103 = pneg %p62
        $region14: #{tpu_custom_call.1} parent=11 // pred_check_branch
          %105 = sbr.rel (%p103) target = $region16
        $region15: #{tpu_custom_call.1} parent=11 // pred_region
          %107 = vsyncadd [#allocation6], 0
          %s108 = sshll.u32 %s1, 4
          %s109 = int_to_ptr.hbm [resolvable:$true] %s108
          %s110 = sshll.u32 [#allocation5], 4
          %s111 = int_to_ptr.vmem [resolvable:$true] %s110
          %116 = dma.hbm_to_vmem [thread:$0]  %s109, 1024, %s111, [#allocation6], 64, 64, 4
        $region16: #{tpu_custom_call.1} parent=11 // pred_fallthru
          _
      $region12: #{tpu_custom_call.1} parent=5 // pred_fallthru
        _
      %p117 = scmp.lt.s32.totalorder %s15, 2
      // Predicated region
      $region17: #{tpu_custom_call.1} parent=5 // pred_check
        %p118 = pneg %p117
      $region18: #{tpu_custom_call.1} parent=5 // pred_check_branch
        %120 = sbr.rel (%p118) target = $region20
      $region19: #{tpu_custom_call.1} parent=5 // pred_region
        // Predicated region
        $region21: #{tpu_custom_call.1} parent=19 // pred_check
          %p121 = pneg %p35
        $region22: #{tpu_custom_call.1} parent=19 // pred_check_branch
          %123 = sbr.rel (%p121) target = $region24
        $region23: #{tpu_custom_call.1} parent=19 // pred_region
          %s124 = sand.u32 %s25, 1
          %s125 = scalar_lea.sflag [#allocation3], %s124
          %s126 = sand.u32 %s25, 1
          %s127 = smul.addr %s126, 128
          %s128 = scalar_lea.vmem [#allocation2], %s127
          %s129 = smul.u32 16, %s15
          %131 = vsyncadd %s125, 0
          %s132 = smul.addr %s129, 8
          %s133 = scalar_lea.hbm %s0, %s132
          %s134 = sshll.u32 %s133, 4
          %s135 = int_to_ptr.hbm [resolvable:$true] %s134
          %s136 = sshll.u32 %s128, 4
          %s137 = int_to_ptr.vmem [resolvable:$true] %s136
          %142 = dma.hbm_to_vmem [thread:$0]  %s135, 2048, %s137, %s125, 128, 128, 8
        $region24: #{tpu_custom_call.1} parent=19 // pred_fallthru
          _
      $region20: #{tpu_custom_call.1} parent=5 // pred_fallthru
        _
      %p143 = scmp.le.s32.totalorder 1, %s15
      %p144 = scmp.lt.s32.totalorder %s15, 3
      %p145 = pnand %p143, %p144
      %p146 = pneg %p145
      // Predicated region
      $region25: #{tpu_custom_call.1} parent=5 // pred_check
        _
      $region26: #{tpu_custom_call.1} parent=5 // pred_check_branch
        %148 = sbr.rel (%p145) target = $region28
      $region27: #{tpu_custom_call.1} parent=5 // pred_region
        %s149 = ssub.s32 %s15, 1
        %s150 = sand.u32 %s28, 1
        %s151 = scalar_lea.sflag [#allocation3], %s150
        %s152 = sand.u32 %s28, 1
        %s153 = smul.addr %s152, 128
        %s154 = scalar_lea.vmem [#allocation2], %s153
        // Predicated region
        $region29: #{tpu_custom_call.1} parent=27 // pred_check
          %p155 = pneg %p41
        $region30: #{tpu_custom_call.1} parent=27 // pred_check_branch
          %157 = sbr.rel (%p155) target = $region32
        $region31: #{tpu_custom_call.1} parent=27 // pred_region
          %159 = dma.done %s151, 2048
        $region32: #{tpu_custom_call.1} parent=27 // pred_fallthru
          _
        // Predicated region
        $region33: #{tpu_custom_call.1} parent=27 // pred_check
          %p160 = pneg %p62
        $region34: #{tpu_custom_call.1} parent=27 // pred_check_branch
          %162 = sbr.rel (%p160) target = $region36
        $region35: #{tpu_custom_call.1} parent=27 // pred_region
          %164 = dma.done [#allocation6], 1024
        $region36: #{tpu_custom_call.1} parent=27 // pred_fallthru
          _
        %s165 = sand.u32 %s28, 1
        %s166 = scalar_lea.sflag [#allocation3], %s165
        %s167 = sand.u32 %s28, 1
        %s168 = smul.addr %s167, 128
        %s169 = scalar_lea.vmem [#allocation2], %s168
        %p170 = pneg %p41
        %p171 = pneg %p38
        %p172 = pneg %p62
        %p173 = pneg %p59
        %p174 = pneg %p88
        %p175 = pneg %p85
        %s176 = sand.u32 %s75, 1
        %s177 = scalar_lea.sflag [#allocation4], %s176
        %s178 = sand.u32 %s75, 1
        %s179 = smul.addr %s178, 64
        %s180 = scalar_lea.vmem [#allocation7], %s179
        %s181 = smul.u32 16, %s20
        %s182 = smul.u32 16, %s20
        %v183 = vld [vmem:[%s154] sm:$0xff]
        %v184 = vld [vmem:[%s154 + $0x8] sm:$0xff]
        %v185 = vld [vmem:[%s154 + $0x10] sm:$0xff]
        %v186 = vld [vmem:[%s154 + $0x18] sm:$0xff]
        %v187 = vld [vmem:[%s154 + $0x20] sm:$0xff]
        %v188 = vld [vmem:[%s154 + $0x28] sm:$0xff]
        %v189 = vld [vmem:[%s154 + $0x30] sm:$0xff]
        %v190 = vld [vmem:[%s154 + $0x38] sm:$0xff]
        %v191 = vld [vmem:[%s154 + $0x40] sm:$0xff]
        %v192 = vld [vmem:[%s154 + $0x48] sm:$0xff]
        %v193 = vld [vmem:[%s154 + $0x50] sm:$0xff]
        %v194 = vld [vmem:[%s154 + $0x58] sm:$0xff]
        %v195 = vld [vmem:[%s154 + $0x60] sm:$0xff]
        %v196 = vld [vmem:[%s154 + $0x68] sm:$0xff]
        %v197 = vld [vmem:[%s154 + $0x70] sm:$0xff]
        %v198 = vld [vmem:[%s154 + $0x78] sm:$0xff]
        %v199 = vpack.c.bf16 %v184, %v183
        %v200 = vpack.c.bf16 %v186, %v185
        %v201 = vpack.c.bf16 %v188, %v187
        %v202 = vpack.c.bf16 %v190, %v189
        %v203 = vpack.c.bf16 %v192, %v191
        %v204 = vpack.c.bf16 %v194, %v193
        %v205 = vpack.c.bf16 %v196, %v195
        %v206 = vpack.c.bf16 %v198, %v197
        %v207 = vld [vmem:[#allocation5] sm:$0xf]
        %v208 = vld [vmem:[#allocation5 + $0x4] sm:$0xf]
        %v209 = vld [vmem:[#allocation5 + $0x8] sm:$0xf]
        %v210 = vld [vmem:[#allocation5 + $0xc] sm:$0xf]
        %v211 = vld [vmem:[#allocation5 + $0x10] sm:$0xf]
        %v212 = vld [vmem:[#allocation5 + $0x14] sm:$0xf]
        %v213 = vld [vmem:[#allocation5 + $0x18] sm:$0xf]
        %v214 = vld [vmem:[#allocation5 + $0x1c] sm:$0xf]
        %v215 = vld [vmem:[#allocation5 + $0x20] sm:$0xf]
        %v216 = vld [vmem:[#allocation5 + $0x24] sm:$0xf]
        %v217 = vld [vmem:[#allocation5 + $0x28] sm:$0xf]
        %v218 = vld [vmem:[#allocation5 + $0x2c] sm:$0xf]
        %v219 = vld [vmem:[#allocation5 + $0x30] sm:$0xf]
        %v220 = vld [vmem:[#allocation5 + $0x34] sm:$0xf]
        %v221 = vld [vmem:[#allocation5 + $0x38] sm:$0xf]
        %v222 = vld [vmem:[#allocation5 + $0x3c] sm:$0xf]
        %v239 = vunpack.c.l.b16 %v207
        %v240 = vunpack.c.l.b16 %v208
        %v241 = vunpack.c.l.b16 %v209
        %v242 = vunpack.c.l.b16 %v210
        %v243 = vunpack.c.l.b16 %v211
        %v244 = vunpack.c.l.b16 %v212
        %v245 = vunpack.c.l.b16 %v213
        %v246 = vunpack.c.l.b16 %v214
        %v247 = vunpack.c.l.b16 %v215
        %v248 = vunpack.c.l.b16 %v216
        %v249 = vunpack.c.l.b16 %v217
        %v250 = vunpack.c.l.b16 %v218
        %v251 = vunpack.c.l.b16 %v219
        %v252 = vunpack.c.l.b16 %v220
        %v253 = vunpack.c.l.b16 %v221
        %v254 = vunpack.c.l.b16 %v222
        %v255 = vpack.c.b16 %v240, %v239
        %v256 = vpack.c.b16 %v242, %v241
        %v257 = vpack.c.b16 %v244, %v243
        %v258 = vpack.c.b16 %v246, %v245
        %v259 = vpack.c.b16 %v248, %v247
        %v260 = vpack.c.b16 %v250, %v249
        %v261 = vpack.c.b16 %v252, %v251
        %v262 = vpack.c.b16 %v254, %v253
        %271 = vmatpush.bf16.msra.mxu0 %v262
        %272 = vmatpush.bf16.msra.mxu0 %v261
        %273 = vmatpush.bf16.msra.mxu0 %v260
        %274 = vmatpush.bf16.msra.mxu0 %v259
        %275 = vmatpush.bf16.msra.mxu0 %v258
        %276 = vmatpush.bf16.msra.mxu0 %v257
        %277 = vmatpush.bf16.msra.mxu0 %v256
        %278 = vmatpush.bf16.msra.mxu0 %v255
        %279 = vmatmul.bf16.gmra.mxu0 %v199
        %v280 = vpop.f32.mrf.mxu0
        %v281 = vadd.f32 0.0, %v280
        %v282 = vpop.f32.mrf.mxu0
        %v283 = vadd.f32 0.0, %v282
        %284 = vmatmul.bf16.gmra.mxu0 %v200
        %v285 = vpop.f32.mrf.mxu0
        %v286 = vadd.f32 0.0, %v285
        %v287 = vpop.f32.mrf.mxu0
        %v288 = vadd.f32 0.0, %v287
        %289 = vmatmul.bf16.gmra.mxu0 %v201
        %v290 = vpop.f32.mrf.mxu0
        %v291 = vadd.f32 0.0, %v290
        %v292 = vpop.f32.mrf.mxu0
        %v293 = vadd.f32 0.0, %v292
        %294 = vmatmul.bf16.gmra.mxu0 %v202
        %v295 = vpop.f32.mrf.mxu0
        %v296 = vadd.f32 0.0, %v295
        %v297 = vpop.f32.mrf.mxu0
        %v298 = vadd.f32 0.0, %v297
        %299 = vmatmul.bf16.gmra.mxu0 %v203
        %v300 = vpop.f32.mrf.mxu0
        %v301 = vadd.f32 0.0, %v300
        %v302 = vpop.f32.mrf.mxu0
        %v303 = vadd.f32 0.0, %v302
        %304 = vmatmul.bf16.gmra.mxu0 %v204
        %v305 = vpop.f32.mrf.mxu0
        %v306 = vadd.f32 0.0, %v305
        %v307 = vpop.f32.mrf.mxu0
        %v308 = vadd.f32 0.0, %v307
        %309 = vmatmul.bf16.gmra.mxu0 %v205
        %v310 = vpop.f32.mrf.mxu0
        %v311 = vadd.f32 0.0, %v310
        %v312 = vpop.f32.mrf.mxu0
        %v313 = vadd.f32 0.0, %v312
        %314 = vmatmul.bf16.gmra.mxu0 %v206
        %v315 = vpop.f32.mrf.mxu0
        %v316 = vadd.f32 0.0, %v315
        %v317 = vpop.f32.mrf.mxu0
        %v318 = vadd.f32 0.0, %v317
        %319 = vdwg.mxu0
        %v320 = vpack.c.bf16 %v281, %v281
        %v321 = vpack.c.bf16 %v283, %v283
        %v322 = vpack.c.bf16 %v286, %v286
        %v323 = vpack.c.bf16 %v288, %v288
        %v324 = vpack.c.bf16 %v291, %v291
        %v325 = vpack.c.bf16 %v293, %v293
        %v326 = vpack.c.bf16 %v296, %v296
        %v327 = vpack.c.bf16 %v298, %v298
        %v328 = vpack.c.bf16 %v301, %v301
        %v329 = vpack.c.bf16 %v303, %v303
        %v330 = vpack.c.bf16 %v306, %v306
        %v331 = vpack.c.bf16 %v308, %v308
        %v332 = vpack.c.bf16 %v311, %v311
        %v333 = vpack.c.bf16 %v313, %v313
        %v334 = vpack.c.bf16 %v316, %v316
        %v335 = vpack.c.bf16 %v318, %v318
        %336 = vst [vmem:[%s180] sm:$0xf] %v320
        %337 = vst [vmem:[%s180 + $0x4] sm:$0xf] %v321
        %338 = vst [vmem:[%s180 + $0x8] sm:$0xf] %v322
        %339 = vst [vmem:[%s180 + $0xc] sm:$0xf] %v323
        %340 = vst [vmem:[%s180 + $0x10] sm:$0xf] %v324
        %341 = vst [vmem:[%s180 + $0x14] sm:$0xf] %v325
        %342 = vst [vmem:[%s180 + $0x18] sm:$0xf] %v326
        %343 = vst [vmem:[%s180 + $0x1c] sm:$0xf] %v327
        %344 = vst [vmem:[%s180 + $0x20] sm:$0xf] %v328
        %345 = vst [vmem:[%s180 + $0x24] sm:$0xf] %v329
        %346 = vst [vmem:[%s180 + $0x28] sm:$0xf] %v330
        %347 = vst [vmem:[%s180 + $0x2c] sm:$0xf] %v331
        %348 = vst [vmem:[%s180 + $0x30] sm:$0xf] %v332
        %349 = vst [vmem:[%s180 + $0x34] sm:$0xf] %v333
        %350 = vst [vmem:[%s180 + $0x38] sm:$0xf] %v334
        %351 = vst [vmem:[%s180 + $0x3c] sm:$0xf] %v335
        %s352 = sand.u32 %s75, 1
        %s353 = scalar_lea.sflag [#allocation4], %s352
        %s354 = sand.u32 %s75, 1
        %s355 = smul.addr %s354, 64
        %s356 = scalar_lea.vmem [#allocation7], %s355
        // Predicated region
        $region37: #{tpu_custom_call.1} parent=27 // pred_check
          %p357 = pneg %p85
        $region38: #{tpu_custom_call.1} parent=27 // pred_check_branch
          %359 = sbr.rel (%p357) target = $region40
        $region39: #{tpu_custom_call.1} parent=27 // pred_region
          %s360 = smul.u32 16, %s20
          %362 = vsyncadd %s353, 0
          %s363 = smul.addr %s360, 4
          %s364 = scalar_lea.hbm %s2, %s363
          %s365 = sshll.u32 %s356, 4
          %s366 = int_to_ptr.vmem [resolvable:$true] %s365
          %s367 = sshll.u32 %s364, 4
          %s368 = int_to_ptr.hbm [resolvable:$true] %s367
          %373 = dma.vmem_to_hbm [thread:$0]  %s366, 1024, %s368, %s353, 64, 64, 4
        $region40: #{tpu_custom_call.1} parent=27 // pred_fallthru
          _
      $region28: #{tpu_custom_call.1} parent=5 // pred_fallthru
        _
      %p374 = scmp.le.s32.totalorder 2, %s15
      // Predicated region
      $region41: #{tpu_custom_call.1} parent=5 // pred_check
        %p375 = pneg %p374
      $region42: #{tpu_custom_call.1} parent=5 // pred_check_branch
        %377 = sbr.rel (%p375) target = $region44
      $region43: #{tpu_custom_call.1} parent=5 // pred_region
        %s378 = ssub.s32 %s15, 2
        // Predicated region
        $region45: #{tpu_custom_call.1} parent=43 // pred_check
          %p379 = pneg %p91
        $region46: #{tpu_custom_call.1} parent=43 // pred_check_branch
          %381 = sbr.rel (%p379) target = $region48
        $region47: #{tpu_custom_call.1} parent=43 // pred_region
          %s382 = sand.u32 %s76, 1
          %s383 = scalar_lea.sflag [#allocation4], %s382
          %s384 = sand.u32 %s76, 1
          %s385 = smul.addr %s384, 64
          %s386 = scalar_lea.vmem [#allocation7], %s385
          %388 = dma.done %s383, 1024
        $region48: #{tpu_custom_call.1} parent=43 // pred_fallthru
          _
      $region44: #{tpu_custom_call.1} parent=5 // pred_fallthru
        _
    $region6: #{tpu_custom_call.1} parent=1 // loop_footer
      %s19 = sadd.s32 1, %s15
    $region7: #{tpu_custom_call.1} parent=1 // loop_footer_branch
      %14 = sbr.rel target = $region3
    $region8: #{tpu_custom_call.1} parent=1 // loop_exit
      _
    %389 = vsyncpa [#allocation3], 1
    %s390 = scalar_lea.sflag [#allocation3], 1
    %391 = vsyncpa %s390, 1
    %392 = vsyncpa [#allocation6], 1
    %393 = vsyncpa [#allocation4], 1
    %s394 = scalar_lea.sflag [#allocation4], 1
    %395 = vsyncpa %s394, 1

</llo_original>
